<compile_context>
chip_gen: v5e
topology: v5e:2x2
jax: 0.10.0
libtpu: 0.0.40
codegen_flags: <defaults>
</compile_context>

<pallas_src>
import functools

import jax
import jax.numpy as jnp
from jax import lax
from jax.experimental import pallas as pl
from jax.experimental.pallas import tpu as pltpu


def _conv3x3_kernel(x_ref, w_ref, b_ref, o_ref, *, out_w: int, apply_sigmoid: bool):
    # x_ref: (1, th+2, wp, cin)    halo'd input row tile (bf16 or f32)
    # w_ref: (9, cin, cout)        per-tap weights, tap index = kh*3 + kw   [resident]
    # b_ref: (1, cout)             f32 bias                                  [resident]
    # o_ref: (1, th*out_w, cout)   flat f32 output row tile
    _, th_p2, wp, cin = x_ref.shape
    th = th_p2 - 2
    cout = o_ref.shape[-1]

    x = x_ref[0]                                              # (th+2, wp, cin)

    # 9 accumulating MXU dots into a single f32 accumulator (no materialized im2col).
    acc = jnp.zeros((th * out_w, cout), jnp.float32)
    # kw shifts hoisted out of the kh loop: 3 sublane-shifted views instead of 9.
    for kw in range(3):
        xs = x[:, kw:kw + out_w, :].reshape((th + 2) * out_w, cin)
        for kh in range(3):
            # Slice start kh*out_w is sublane-aligned when out_w % 8 == 0.
            lhs = xs[kh * out_w:(kh + th) * out_w, :]
            acc += jnp.dot(lhs, w_ref[kh * 3 + kw],
                           preferred_element_type=jnp.float32)

    acc = acc + b_ref[...].astype(jnp.float32)                # (1, cout) broadcasts
    if apply_sigmoid:
        acc = jax.nn.sigmoid(acc)
    o_ref[0] = acc.astype(o_ref.dtype)


def conv_layer_forward_nhwc(x_nhwc, weight_oihw, bias, *,
                            padding: bool = True,
                            reflection: bool = True,
                            sigmoid: bool = False,
                            block_h: int | None = None,
                            use_bf16_matmul: bool = True):
    """NHWC core of ConvLayer.forward (kernel_size=3). Returns (N, Ho, Wo, Cout) f32."""
    N, H, W, Cin = x_nhwc.shape
    Cout, Cin_w, KH, KW = weight_oihw.shape
    assert (KH, KW) == (3, 3) and Cin_w == Cin

    # ReflectionPad2d(1) / ZeroPad2d(1) done in the wrapper (fuses with the row-window
    # build into a single XLA copy pass).
    if padding:
        mode = "reflect" if reflection else "constant"
        xp = jnp.pad(x_nhwc, ((0, 0), (1, 1), (1, 1), (0, 0)), mode=mode)
    else:
        xp = x_nhwc
    Hp, Wp = int(xp.shape[1]), int(xp.shape[2])
    Ho, Wo = Hp - 2, Wp - 2

    # Row tiling: each grid step handles `block_h` output rows with a 1-row halo.
    if block_h is None:
        block_h = 32
    block_h = max(1, min(block_h, Ho))
    R = -(-Ho // block_h)

    # Bottom zero-pad so the last row tile has a full (block_h + 2)-row window.
    rows_needed = R * block_h + 2
    if rows_needed > Hp:
        xp = jnp.pad(xp, ((0, 0), (0, rows_needed - Hp), (0, 0), (0, 0)))
    # Sublane-align the padded width (extra zero columns are never read by the 3x3 taps).
    Wp8 = -(-Wp // 8) * 8
    if Wp8 > Wp:
        xp = jnp.pad(xp, ((0, 0), (0, 0), (0, Wp8 - Wp), (0, 0)))

    compute_dtype = jnp.bfloat16 if use_bf16_matmul else jnp.float32
    xp = xp.astype(compute_dtype)

    # Overlapping 1-row-halo row windows: (N*R, block_h+2, Wp8, Cin).
    xw = jnp.stack([xp[:, r * block_h:r * block_h + block_h + 2] for r in range(R)],
                   axis=1).reshape(N * R, block_h + 2, Wp8, Cin)

    # One-time weight prep: OIHW -> (9, Cin, Cout), tap-major over (kh, kw).
    w = jnp.transpose(weight_oihw, (2, 3, 1, 0)).reshape(9, Cin, Cout).astype(compute_dtype)
    b = bias.reshape(1, Cout).astype(jnp.float32)

    kernel = functools.partial(_conv3x3_kernel, out_w=Wo, apply_sigmoid=sigmoid)

    flops = 2 * N * R * block_h * Wo * 9 * Cin * Cout
    bytes_accessed = int(xw.size) * xw.dtype.itemsize + int(w.size) * w.dtype.itemsize \
        + int(b.size) * 4 + N * R * block_h * Wo * Cout * 4
    cost = pl.CostEstimate(
        flops=int(flops),
        transcendentals=int(N * R * block_h * Wo * Cout) if sigmoid else 0,
        bytes_accessed=int(bytes_accessed))

    out = pl.pallas_call(
        kernel,
        out_shape=jax.ShapeDtypeStruct((N * R, block_h * Wo, Cout), jnp.float32),
        grid_spec=pltpu.PrefetchScalarGridSpec(
            num_scalar_prefetch=0,
            grid=(N * R,),
            in_specs=[
                pl.BlockSpec((1, block_h + 2, Wp8, Cin), lambda i: (i, 0, 0, 0)),
                pl.BlockSpec((9, Cin, Cout), lambda i: (0, 0, 0)),   # resident weights
                pl.BlockSpec((1, Cout), lambda i: (0, 0)),           # resident bias
            ],
            out_specs=pl.BlockSpec((1, block_h * Wo, Cout), lambda i: (i, 0, 0)),
        ),
        compiler_params=pltpu.CompilerParams(
            dimension_semantics=("parallel",),
            vmem_limit_bytes=64 * 1024 * 1024,
        ),
        cost_estimate=cost,
    )(xw, w, b)

    out = out.reshape(N, R * block_h, Wo, Cout)
    if R * block_h != Ho:
        out = out[:, :Ho]
    return out


def conv_layer_forward(x_nchw, weight_oihw, bias, **kwargs):
    """PyTorch-interface wrapper: NCHW in / NCHW out.

    Prefer conv_layer_forward_nhwc in an NHWC model — these two transposes are each a
    full extra HBM pass and exist only for PyTorch layout parity.
    """
    x = jnp.transpose(x_nchw, (0, 2, 3, 1))
    out = conv_layer_forward_nhwc(x, weight_oihw, bias, **kwargs)
    return jnp.transpose(out, (0, 3, 1, 2))


def _reference_conv(x_nchw, weight_oihw, bias, *, padding=True, reflection=True,
                    sigmoid=False):
    x = x_nchw
    if padding:
        mode = "reflect" if reflection else "constant"
        x = jnp.pad(x, ((0, 0), (0, 0), (1, 1), (1, 1)), mode=mode)
    out = lax.conv_general_dilated(
        x, weight_oihw, window_strides=(1, 1), padding="VALID",
        dimension_numbers=("NCHW", "OIHW", "NCHW"))
    out = out + bias.reshape(1, -1, 1, 1)
    if sigmoid:
        out = jax.nn.sigmoid(out)
    return out


if __name__ == "__main__":
    key = jax.random.PRNGKey(0)
    k_x, k_w, k_b = jax.random.split(key, 3)

    N, Cin, H, W = 2, 4, 16, 16
    Cout = 8

    x = jax.random.normal(k_x, (N, Cin, H, W), dtype=jnp.float32)
    # Deterministic synthetic parameters (PyTorch Conv2d shapes: (Cout, Cin, 3, 3), (Cout,)).
    weight = jax.random.normal(k_w, (Cout, Cin, 3, 3), dtype=jnp.float32) * 0.1
    bias = jax.random.normal(k_b, (Cout,), dtype=jnp.float32) * 0.1

    # Exact f32 path (reflection pad, no sigmoid), block_h=8 -> 2 row tiles per image.
    out = conv_layer_forward(x, weight, bias, padding=True, reflection=True,
                             sigmoid=False, block_h=8, use_bf16_matmul=False)
    out = jax.block_until_ready(out)
    ref = _reference_conv(x, weight, bias, padding=True, reflection=True, sigmoid=False)
    assert out.shape == (N, Cout, H, W)
    assert jnp.allclose(out, ref, atol=1e-4, rtol=1e-4)

    # bf16-operand path (zero pad + sigmoid) — f32 accumulation, looser tolerance.
    out2 = jax.block_until_ready(
        conv_layer_forward(x, weight, bias, padding=True, reflection=False,
                           sigmoid=True, block_h=8, use_bf16_matmul=True))
    ref2 = _reference_conv(x, weight, bias, padding=True, reflection=False, sigmoid=True)
    assert out2.shape == (N, Cout, H, W)
    assert jnp.allclose(out2, ref2, atol=2e-2, rtol=2e-2)

    print("KERNEL_OK")
</pallas_src>

<mosaic_0001>
module attributes {stable_mosaic.version = 11 : i64} {
  func.func @_conv3x3_kernel(%arg0: i32, %arg1: memref<1x10x24x4xf32, #tpu.memory_space<vmem>>, %arg2: memref<9x4x8xf32, #tpu.memory_space<vmem>>, %arg3: memref<1x8xf32, #tpu.memory_space<vmem>>, %arg4: memref<1x128x8xf32, #tpu.memory_space<vmem>>) attributes {dimension_semantics = [#tpu.dimension_semantics<parallel>], iteration_bounds = array<i64: 4>, scalar_prefetch = 0 : i64, scratch_operands = 0 : i64, tpu.core_type = #tpu.core_type<tc>, window_params = [{transform_indices = @transform_0, window_bounds = array<i64: 1, 10, 24, 4>}, {pipeline_mode = #tpu.pipeline_mode<synchronous>, transform_indices = @transform_1, window_bounds = array<i64: 9, 4, 8>}, {pipeline_mode = #tpu.pipeline_mode<synchronous>, transform_indices = @transform_2, window_bounds = array<i64: 1, 8>}, {transform_indices = @transform_3, window_bounds = array<i64: 1, 128, 8>}]} {
    %c0 = arith.constant 0 : index
    %c0_0 = arith.constant 0 : index
    %c0_1 = arith.constant 0 : index
    %c0_2 = arith.constant 0 : index
    %0 = vector.load %arg1[%c0, %c0_0, %c0_1, %c0_2] : memref<1x10x24x4xf32, #tpu.memory_space<vmem>>, vector<1x10x24x4xf32>
    %1 = vector.shape_cast %0 : vector<1x10x24x4xf32> to vector<10x24x4xf32>
    %cst = arith.constant 0.000000e+00 : f32
    %2 = vector.broadcast %cst : f32 to vector<128x8xf32>
    %3 = vector.extract_strided_slice %1 {offsets = [0, 0, 0], sizes = [10, 16, 4], strides = [1, 1, 1]} : vector<10x24x4xf32> to vector<10x16x4xf32>
    %4 = vector.shape_cast %3 : vector<10x16x4xf32> to vector<160x4xf32>
    %5 = vector.extract_strided_slice %4 {offsets = [0, 0], sizes = [128, 4], strides = [1, 1]} : vector<160x4xf32> to vector<128x4xf32>
    %c0_3 = arith.constant 0 : index
    %c0_4 = arith.constant 0 : index
    %c0_5 = arith.constant 0 : index
    %6 = vector.load %arg2[%c0_3, %c0_4, %c0_5] : memref<9x4x8xf32, #tpu.memory_space<vmem>>, vector<1x4x8xf32>
    %7 = vector.shape_cast %6 : vector<1x4x8xf32> to vector<4x8xf32>
    %cst_6 = arith.constant dense<0.000000e+00> : vector<128x8xf32>
    %8 = tpu.matmul %5, %7, %cst_6 {dimension_numbers = #tpu.dot_dimension_numbers<[1], [0], [0], [1], [0, 0, 1, 1], [], []>} : vector<128x4xf32>, vector<4x8xf32>, vector<128x8xf32> -> vector<128x8xf32>
    %9 = arith.addf %2, %8 : vector<128x8xf32>
    %10 = vector.extract_strided_slice %4 {offsets = [16, 0], sizes = [128, 4], strides = [1, 1]} : vector<160x4xf32> to vector<128x4xf32>
    %c3 = arith.constant 3 : index
    %c0_7 = arith.constant 0 : index
    %c0_8 = arith.constant 0 : index
    %11 = vector.load %arg2[%c3, %c0_7, %c0_8] : memref<9x4x8xf32, #tpu.memory_space<vmem>>, vector<1x4x8xf32>
    %12 = vector.shape_cast %11 : vector<1x4x8xf32> to vector<4x8xf32>
    %cst_9 = arith.constant dense<0.000000e+00> : vector<128x8xf32>
    %13 = tpu.matmul %10, %12, %cst_9 {dimension_numbers = #tpu.dot_dimension_numbers<[1], [0], [0], [1], [0, 0, 1, 1], [], []>} : vector<128x4xf32>, vector<4x8xf32>, vector<128x8xf32> -> vector<128x8xf32>
    %14 = arith.addf %9, %13 : vector<128x8xf32>
    %15 = vector.extract_strided_slice %4 {offsets = [32, 0], sizes = [128, 4], strides = [1, 1]} : vector<160x4xf32> to vector<128x4xf32>
    %c6 = arith.constant 6 : index
    %c0_10 = arith.constant 0 : index
    %c0_11 = arith.constant 0 : index
    %16 = vector.load %arg2[%c6, %c0_10, %c0_11] : memref<9x4x8xf32, #tpu.memory_space<vmem>>, vector<1x4x8xf32>
    %17 = vector.shape_cast %16 : vector<1x4x8xf32> to vector<4x8xf32>
    %cst_12 = arith.constant dense<0.000000e+00> : vector<128x8xf32>
    %18 = tpu.matmul %15, %17, %cst_12 {dimension_numbers = #tpu.dot_dimension_numbers<[1], [0], [0], [1], [0, 0, 1, 1], [], []>} : vector<128x4xf32>, vector<4x8xf32>, vector<128x8xf32> -> vector<128x8xf32>
    %19 = arith.addf %14, %18 : vector<128x8xf32>
    %20 = vector.extract_strided_slice %1 {offsets = [0, 1, 0], sizes = [10, 16, 4], strides = [1, 1, 1]} : vector<10x24x4xf32> to vector<10x16x4xf32>
    %21 = vector.shape_cast %20 : vector<10x16x4xf32> to vector<160x4xf32>
    %22 = vector.extract_strided_slice %21 {offsets = [0, 0], sizes = [128, 4], strides = [1, 1]} : vector<160x4xf32> to vector<128x4xf32>
    %c1 = arith.constant 1 : index
    %c0_13 = arith.constant 0 : index
    %c0_14 = arith.constant 0 : index
    %23 = vector.load %arg2[%c1, %c0_13, %c0_14] : memref<9x4x8xf32, #tpu.memory_space<vmem>>, vector<1x4x8xf32>
    %24 = vector.shape_cast %23 : vector<1x4x8xf32> to vector<4x8xf32>
    %cst_15 = arith.constant dense<0.000000e+00> : vector<128x8xf32>
    %25 = tpu.matmul %22, %24, %cst_15 {dimension_numbers = #tpu.dot_dimension_numbers<[1], [0], [0], [1], [0, 0, 1, 1], [], []>} : vector<128x4xf32>, vector<4x8xf32>, vector<128x8xf32> -> vector<128x8xf32>
    %26 = arith.addf %19, %25 : vector<128x8xf32>
    %27 = vector.extract_strided_slice %21 {offsets = [16, 0], sizes = [128, 4], strides = [1, 1]} : vector<160x4xf32> to vector<128x4xf32>
    %c4 = arith.constant 4 : index
    %c0_16 = arith.constant 0 : index
    %c0_17 = arith.constant 0 : index
    %28 = vector.load %arg2[%c4, %c0_16, %c0_17] : memref<9x4x8xf32, #tpu.memory_space<vmem>>, vector<1x4x8xf32>
    %29 = vector.shape_cast %28 : vector<1x4x8xf32> to vector<4x8xf32>
    %cst_18 = arith.constant dense<0.000000e+00> : vector<128x8xf32>
    %30 = tpu.matmul %27, %29, %cst_18 {dimension_numbers = #tpu.dot_dimension_numbers<[1], [0], [0], [1], [0, 0, 1, 1], [], []>} : vector<128x4xf32>, vector<4x8xf32>, vector<128x8xf32> -> vector<128x8xf32>
    %31 = arith.addf %26, %30 : vector<128x8xf32>
    %32 = vector.extract_strided_slice %21 {offsets = [32, 0], sizes = [128, 4], strides = [1, 1]} : vector<160x4xf32> to vector<128x4xf32>
    %c7 = arith.constant 7 : index
    %c0_19 = arith.constant 0 : index
    %c0_20 = arith.constant 0 : index
    %33 = vector.load %arg2[%c7, %c0_19, %c0_20] : memref<9x4x8xf32, #tpu.memory_space<vmem>>, vector<1x4x8xf32>
    %34 = vector.shape_cast %33 : vector<1x4x8xf32> to vector<4x8xf32>
    %cst_21 = arith.constant dense<0.000000e+00> : vector<128x8xf32>
    %35 = tpu.matmul %32, %34, %cst_21 {dimension_numbers = #tpu.dot_dimension_numbers<[1], [0], [0], [1], [0, 0, 1, 1], [], []>} : vector<128x4xf32>, vector<4x8xf32>, vector<128x8xf32> -> vector<128x8xf32>
    %36 = arith.addf %31, %35 : vector<128x8xf32>
    %37 = vector.extract_strided_slice %1 {offsets = [0, 2, 0], sizes = [10, 16, 4], strides = [1, 1, 1]} : vector<10x24x4xf32> to vector<10x16x4xf32>
    %38 = vector.shape_cast %37 : vector<10x16x4xf32> to vector<160x4xf32>
    %39 = vector.extract_strided_slice %38 {offsets = [0, 0], sizes = [128, 4], strides = [1, 1]} : vector<160x4xf32> to vector<128x4xf32>
    %c2 = arith.constant 2 : index
    %c0_22 = arith.constant 0 : index
    %c0_23 = arith.constant 0 : index
    %40 = vector.load %arg2[%c2, %c0_22, %c0_23] : memref<9x4x8xf32, #tpu.memory_space<vmem>>, vector<1x4x8xf32>
    %41 = vector.shape_cast %40 : vector<1x4x8xf32> to vector<4x8xf32>
    %cst_24 = arith.constant dense<0.000000e+00> : vector<128x8xf32>
    %42 = tpu.matmul %39, %41, %cst_24 {dimension_numbers = #tpu.dot_dimension_numbers<[1], [0], [0], [1], [0, 0, 1, 1], [], []>} : vector<128x4xf32>, vector<4x8xf32>, vector<128x8xf32> -> vector<128x8xf32>
    %43 = arith.addf %36, %42 : vector<128x8xf32>
    %44 = vector.extract_strided_slice %38 {offsets = [16, 0], sizes = [128, 4], strides = [1, 1]} : vector<160x4xf32> to vector<128x4xf32>
    %c5 = arith.constant 5 : index
    %c0_25 = arith.constant 0 : index
    %c0_26 = arith.constant 0 : index
    %45 = vector.load %arg2[%c5, %c0_25, %c0_26] : memref<9x4x8xf32, #tpu.memory_space<vmem>>, vector<1x4x8xf32>
    %46 = vector.shape_cast %45 : vector<1x4x8xf32> to vector<4x8xf32>
    %cst_27 = arith.constant dense<0.000000e+00> : vector<128x8xf32>
    %47 = tpu.matmul %44, %46, %cst_27 {dimension_numbers = #tpu.dot_dimension_numbers<[1], [0], [0], [1], [0, 0, 1, 1], [], []>} : vector<128x4xf32>, vector<4x8xf32>, vector<128x8xf32> -> vector<128x8xf32>
    %48 = arith.addf %43, %47 : vector<128x8xf32>
    %49 = vector.extract_strided_slice %38 {offsets = [32, 0], sizes = [128, 4], strides = [1, 1]} : vector<160x4xf32> to vector<128x4xf32>
    %c8 = arith.constant 8 : index
    %c0_28 = arith.constant 0 : index
    %c0_29 = arith.constant 0 : index
    %50 = vector.load %arg2[%c8, %c0_28, %c0_29] : memref<9x4x8xf32, #tpu.memory_space<vmem>>, vector<1x4x8xf32>
    %51 = vector.shape_cast %50 : vector<1x4x8xf32> to vector<4x8xf32>
    %cst_30 = arith.constant dense<0.000000e+00> : vector<128x8xf32>
    %52 = tpu.matmul %49, %51, %cst_30 {dimension_numbers = #tpu.dot_dimension_numbers<[1], [0], [0], [1], [0, 0, 1, 1], [], []>} : vector<128x4xf32>, vector<4x8xf32>, vector<128x8xf32> -> vector<128x8xf32>
    %53 = arith.addf %48, %52 : vector<128x8xf32>
    %c0_31 = arith.constant 0 : index
    %c0_32 = arith.constant 0 : index
    %54 = vector.load %arg3[%c0_31, %c0_32] : memref<1x8xf32, #tpu.memory_space<vmem>>, vector<1x8xf32>
    %55 = vector.broadcast %54 : vector<1x8xf32> to vector<128x8xf32>
    %56 = arith.addf %53, %55 : vector<128x8xf32>
    %c0_33 = arith.constant 0 : index
    %c0_34 = arith.constant 0 : index
    %c0_35 = arith.constant 0 : index
    %57 = vector.load %arg4[%c0_33, %c0_34, %c0_35] : memref<1x128x8xf32, #tpu.memory_space<vmem>>, vector<1x128x8xf32>
    %58 = vector.shape_cast %57 : vector<1x128x8xf32> to vector<128x8xf32>
    %59 = vector.shape_cast %56 : vector<128x8xf32> to vector<1x128x8xf32>
    tpu.vector_store %arg4[%c0_33, %c0_34, %c0_35], %59 {strides = array<i32>} : memref<1x128x8xf32, #tpu.memory_space<vmem>>, vector<1x128x8xf32>,
    return
  }
  func.func @transform_0(%arg0: i32) -> (i32, i32, i32, i32) {
    %c0_i32 = arith.constant 0 : i32
    %c0_i32_0 = arith.constant 0 : i32
    %c0_i32_1 = arith.constant 0 : i32
    %c0_i32_2 = arith.constant 0 : i32
    return %arg0, %c0_i32, %c0_i32_0, %c0_i32_1 : i32, i32, i32, i32
  }
  func.func @transform_1(%arg0: i32) -> (i32, i32, i32) {
    %c0_i32 = arith.constant 0 : i32
    %c0_i32_0 = arith.constant 0 : i32
    %c0_i32_1 = arith.constant 0 : i32
    %c0_i32_2 = arith.constant 0 : i32
    return %c0_i32, %c0_i32_0, %c0_i32_1 : i32, i32, i32
  }
  func.func @transform_2(%arg0: i32) -> (i32, i32) {
    %c0_i32 = arith.constant 0 : i32
    %c0_i32_0 = arith.constant 0 : i32
    %c0_i32_1 = arith.constant 0 : i32
    return %c0_i32, %c0_i32_0 : i32, i32
  }
  func.func @transform_3(%arg0: i32) -> (i32, i32, i32) {
    %c0_i32 = arith.constant 0 : i32
    %c0_i32_0 = arith.constant 0 : i32
    %c0_i32_1 = arith.constant 0 : i32
    return %arg0, %c0_i32, %c0_i32_0 : i32, i32, i32
  }
}

</mosaic_0001>

<llo_original>
// kernel: tpu_custom_call.1
$region0: #{tpu_custom_call.1}
  #allocation0 [shape = 'u32[]', space=smem, size = 0x4, offset = 0x4, fixed_abs, tag = 'smem constant byte address 0x4 - core index']
  #allocation1 [shape = 'u32[72,128]{1,0:T(1,128)}', space=vmem, size = 0x9000, scoped, tag = 'internal scratch']
  %s0 = inlined_call_operand.vmem [shape: f32[4,10,24,4], index: 0, kind: input, shape index: {}]
  %s1 = inlined_call_operand.vmem [shape: f32[9,4,8], index: 1, kind: input, shape index: {}]
  %s2 = inlined_call_operand.vmem [shape: f32[1,8], index: 2, kind: input, shape index: {}]
  %s3 = inlined_call_operand.vmem [shape: f32[4,128,8], index: 3, kind: output, shape index: {}]
  %s4 = sld [smem:[#allocation0]]
  $region45: #{tpu_custom_call.1} parent=0
    _
  %s6 = ssub.s32 1, %s4
  %s7 = scalar_select 0, %s6, %s4
  loop: start=0, step=1, limit=6
  $region2: #{tpu_custom_call.1} parent=0 // loop_pre_header
    _
  $region3: #{tpu_custom_call.1} parent=0 // loop_header
    %s9 = sphi 0, %s13
    %p10 = scmp.ge.s32.totalorder %s9, 6
    %s19 = sphi 0, %s21
    %s22 = sphi 0, %s19
    %s23 = sphi 0, %s22
    %s39 = sphi 0, %s23
    %s43 = sphi 0, %s43
    %s45 = sphi 0, %s43
    %s46 = sphi 0, %s45
    %s60 = sphi 0, %s46
    %s64 = sphi 0, %s64
    %s66 = sphi 0, %s64
    %s67 = sphi 0, %s66
    %s81 = sphi 0, %s67
    %s87 = sphi 0, %s89
    %s90 = sphi 0, %s87
    %s91 = sphi 0, %s90
    %s107 = sphi 0, %s91
  $region4: #{tpu_custom_call.1} parent=0 // loop_header_branch
    %12 = sbr.rel (%p10) target = $region8
  $region5: #{tpu_custom_call.1} parent=0 // loop_body
    %s14 = ssub.s32 %s9, 1
    %s15 = ssub.s32 %s9, 2
    %s16 = sadd.s32 %s9, 1
    %s17 = ssub.s32 %s9, %s16
    %p18 = scmp.eq.s32.totalorder %s17, 0
    %s20 = sadd.s32 %s19, 1
    %s21 = scalar_select %p18, %s19, %s20
    %p24 = pneg %p18
    %p25 = scmp.eq.s32.totalorder %s9, 3
    %p26 = por %p24, %p25
    %p27 = scmp.ne.s32.totalorder %s19, %s22
    %p28 = scmp.eq.s32.totalorder %s9, 0
    %p29 = por %p27, %p28
    %p30 = scmp.ne.s32.totalorder %s19, %s22
    %p31 = scmp.eq.s32.totalorder %s14, 3
    %p32 = por %p30, %p31
    %p33 = scmp.ne.s32.totalorder %s22, %s23
    %p34 = scmp.eq.s32.totalorder %s14, 0
    %p35 = por %p33, %p34
    %p36 = scmp.ne.s32.totalorder %s22, %s23
    %p37 = scmp.eq.s32.totalorder %s15, 3
    %p38 = por %p36, %p37
    %p40 = scmp.ne.s32.totalorder %s23, %s39
    %p41 = scmp.eq.s32.totalorder %s15, 0
    %p42 = por %p40, %p41
    %s44 = sadd.s32 %s43, 1
    %p47 = scmp.eq.s32.totalorder %s9, 3
    %p48 = scmp.ne.s32.totalorder %s43, %s45
    %p49 = scmp.eq.s32.totalorder %s9, 0
    %p50 = por %p48, %p49
    %p51 = scmp.ne.s32.totalorder %s43, %s45
    %p52 = scmp.eq.s32.totalorder %s14, 3
    %p53 = por %p51, %p52
    %p54 = scmp.ne.s32.totalorder %s45, %s46
    %p55 = scmp.eq.s32.totalorder %s14, 0
    %p56 = por %p54, %p55
    %p57 = scmp.ne.s32.totalorder %s45, %s46
    %p58 = scmp.eq.s32.totalorder %s15, 3
    %p59 = por %p57, %p58
    %p61 = scmp.ne.s32.totalorder %s46, %s60
    %p62 = scmp.eq.s32.totalorder %s15, 0
    %p63 = por %p61, %p62
    %s65 = sadd.s32 %s64, 1
    %p68 = scmp.eq.s32.totalorder %s9, 3
    %p69 = scmp.ne.s32.totalorder %s64, %s66
    %p70 = scmp.eq.s32.totalorder %s9, 0
    %p71 = por %p69, %p70
    %p72 = scmp.ne.s32.totalorder %s64, %s66
    %p73 = scmp.eq.s32.totalorder %s14, 3
    %p74 = por %p72, %p73
    %p75 = scmp.ne.s32.totalorder %s66, %s67
    %p76 = scmp.eq.s32.totalorder %s14, 0
    %p77 = por %p75, %p76
    %p78 = scmp.ne.s32.totalorder %s66, %s67
    %p79 = scmp.eq.s32.totalorder %s15, 3
    %p80 = por %p78, %p79
    %p82 = scmp.ne.s32.totalorder %s67, %s81
    %p83 = scmp.eq.s32.totalorder %s15, 0
    %p84 = por %p82, %p83
    %s85 = ssub.s32 %s9, %s16
    %p86 = scmp.eq.s32.totalorder %s85, 0
    %s88 = sadd.s32 %s87, 1
    %s89 = scalar_select %p86, %s87, %s88
    %p92 = pneg %p86
    %p93 = scmp.eq.s32.totalorder %s9, 3
    %p94 = por %p92, %p93
    %p95 = scmp.ne.s32.totalorder %s87, %s90
    %p96 = scmp.eq.s32.totalorder %s9, 0
    %p97 = por %p95, %p96
    %p98 = scmp.ne.s32.totalorder %s87, %s90
    %p99 = scmp.eq.s32.totalorder %s14, 3
    %p100 = por %p98, %p99
    %p101 = scmp.ne.s32.totalorder %s90, %s91
    %p102 = scmp.eq.s32.totalorder %s14, 0
    %p103 = por %p101, %p102
    %p104 = scmp.ne.s32.totalorder %s90, %s91
    %p105 = scmp.eq.s32.totalorder %s15, 3
    %p106 = por %p104, %p105
    %p108 = scmp.ne.s32.totalorder %s91, %s107
    %p109 = scmp.eq.s32.totalorder %s15, 0
    %p110 = por %p108, %p109
    %p111 = scmp.le.s32.totalorder 1, %s9
    %p112 = scmp.lt.s32.totalorder %s9, 5
    %p113 = pnand %p111, %p112
    %p114 = pneg %p113
    // Predicated region
    $region9: #{tpu_custom_call.1} parent=5 // pred_check
      _
    $region10: #{tpu_custom_call.1} parent=5 // pred_check_branch
      %116 = sbr.rel (%p113) target = $region12
    $region11: #{tpu_custom_call.1} parent=5 // pred_region
      %s117 = ssub.s32 %s9, 1
      // Predicated region
      $region13: #{tpu_custom_call.1} parent=11 // pred_check
        %p118 = pneg %p56
      $region14: #{tpu_custom_call.1} parent=11 // pred_check_branch
        %120 = sbr.rel (%p118) target = $region16
      $region15: #{tpu_custom_call.1} parent=11 // pred_region
        _
      $region16: #{tpu_custom_call.1} parent=11 // pred_fallthru
        _
      // Predicated region
      $region17: #{tpu_custom_call.1} parent=11 // pred_check
        %p121 = pneg %p77
      $region18: #{tpu_custom_call.1} parent=11 // pred_check_branch
        %123 = sbr.rel (%p121) target = $region20
      $region19: #{tpu_custom_call.1} parent=11 // pred_region
        _
      $region20: #{tpu_custom_call.1} parent=11 // pred_fallthru
        _
    $region12: #{tpu_custom_call.1} parent=5 // pred_fallthru
      _
    %p124 = scmp.lt.s32.totalorder %s9, 4
    // Predicated region
    $region21: #{tpu_custom_call.1} parent=5 // pred_check
      %p125 = pneg %p124
    $region22: #{tpu_custom_call.1} parent=5 // pred_check_branch
      %127 = sbr.rel (%p125) target = $region24
    $region23: #{tpu_custom_call.1} parent=5 // pred_region
      // Predicated region
      $region25: #{tpu_custom_call.1} parent=23 // pred_check
        %p128 = pneg %p29
      $region26: #{tpu_custom_call.1} parent=23 // pred_check_branch
        %130 = sbr.rel (%p128) target = $region28
      $region27: #{tpu_custom_call.1} parent=23 // pred_region
        %p131 = scmp.lt.s32.totalorder %s9, 3
        %s132 = scalar_select %p131, %s9, 3
        %s133 = smul.addr %s132, 30
        %s134 = smul.addr %s133, 8
        %s135 = scalar_lea.vmem %s0, %s134
      $region28: #{tpu_custom_call.1} parent=23 // pred_fallthru
        _
    $region24: #{tpu_custom_call.1} parent=5 // pred_fallthru
      _
    %p136 = scmp.le.s32.totalorder 1, %s9
    %p137 = scmp.lt.s32.totalorder %s9, 5
    %p138 = pnand %p136, %p137
    %p139 = pneg %p138
    // Predicated region
    $region29: #{tpu_custom_call.1} parent=5 // pred_check
      _
    $region30: #{tpu_custom_call.1} parent=5 // pred_check_branch
      %141 = sbr.rel (%p138) target = $region32
    $region31: #{tpu_custom_call.1} parent=5 // pred_region
      %s142 = ssub.s32 %s9, 1
      %p143 = scmp.lt.s32.totalorder %s14, 3
      %s144 = scalar_select %p143, %s14, 3
      %s145 = smul.addr %s144, 30
      %s146 = smul.addr %s145, 8
      %s147 = scalar_lea.vmem %s0, %s146
      %p148 = pneg %p35
      %p149 = pneg %p32
      %p150 = pneg %p56
      %p151 = pneg %p53
      %p152 = pneg %p77
      %p153 = pneg %p74
      %p154 = pneg %p103
      %p155 = pneg %p100
      %p156 = scmp.lt.s32.totalorder %s14, 3
      %s157 = scalar_select %p156, %s14, 3
      %s158 = smul.addr %s157, 16
      %s159 = smul.addr %s158, 8
      %s160 = scalar_lea.vmem %s3, %s159
      %p161 = scmp.lt.s32.totalorder %s14, 3
      %s162 = scalar_select %p161, %s14, 3
      %s163 = smul.addr %s162, 30
      %s164 = smul.addr %s163, 8
      %s165 = scalar_lea.vmem %s0, %s164
      %p166 = scmp.lt.s32.totalorder %s14, 3
      %s167 = scalar_select %p166, %s14, 3
      %s168 = smul.addr %s167, 16
      %s169 = smul.addr %s168, 8
      %s170 = scalar_lea.vmem %s3, %s169
      %v171 = vld [vmem:[%s165] sm:$0xff]
      %v172 = vld [vmem:[%s165 + $0x8] sm:$0xff]
      %v173 = vld [vmem:[%s165 + $0x10] sm:$0xff]
      %v174 = vld [vmem:[%s165 + $0x18] sm:$0xff]
      %v175 = vld [vmem:[%s165 + $0x20] sm:$0xff]
      %v176 = vld [vmem:[%s165 + $0x28] sm:$0xff]
      %v177 = vld [vmem:[%s165 + $0x30] sm:$0xff]
      %v178 = vld [vmem:[%s165 + $0x38] sm:$0xff]
      %v179 = vld [vmem:[%s165 + $0x40] sm:$0xff]
      %v180 = vld [vmem:[%s165 + $0x48] sm:$0xff]
      %v181 = vld [vmem:[%s165 + $0x50] sm:$0xff]
      %v182 = vld [vmem:[%s165 + $0x58] sm:$0xff]
      %v183 = vld [vmem:[%s165 + $0x60] sm:$0xff]
      %v184 = vld [vmem:[%s165 + $0x68] sm:$0xff]
      %v185 = vld [vmem:[%s165 + $0x70] sm:$0xff]
      %v186 = vld [vmem:[%s165 + $0x78] sm:$0xff]
      %v187 = vld [vmem:[%s165 + $0x80] sm:$0xff]
      %v188 = vld [vmem:[%s165 + $0x88] sm:$0xff]
      %v189 = vld [vmem:[%s165 + $0x90] sm:$0xff]
      %v190 = vld [vmem:[%s165 + $0x98] sm:$0xff]
      %v191 = vld [vmem:[%s165 + $0xa0] sm:$0xff]
      %v192 = vld [vmem:[%s165 + $0xa8] sm:$0xff]
      %v193 = vld [vmem:[%s165 + $0xb0] sm:$0xff]
      %v194 = vld [vmem:[%s165 + $0xb8] sm:$0xff]
      %v195 = vld [vmem:[%s165 + $0xc0] sm:$0xff]
      %v196 = vld [vmem:[%s165 + $0xc8] sm:$0xff]
      %v197 = vld [vmem:[%s165 + $0xd0] sm:$0xff]
      %v198 = vld [vmem:[%s165 + $0xd8] sm:$0xff]
      %v199 = vld [vmem:[%s165 + $0xe0] sm:$0xff]
      %v200 = vld [vmem:[%s165 + $0xe8] sm:$0xff]
      %v201 = vld [vmem:[%s1] sm:$0xf]
      %s202 = scalar_lea.vmem %s1, 12
      %v203 = vld [vmem:[%s202] sm:$0xf]
      %vm204 = vcmask 31744
      %v206 = vsel %vm204, %v174, 0
      %v209 = vsel %vm204, %v175, 0
      %v212 = vsel %vm204, %v177, 0
      %v215 = vsel %vm204, %v178, 0
      %v218 = vsel %vm204, %v180, 0
      %v221 = vsel %vm204, %v181, 0
      %v224 = vsel %vm204, %v183, 0
      %v227 = vsel %vm204, %v184, 0
      %v230 = vsel %vm204, %v186, 0
      %v233 = vsel %vm204, %v187, 0
      %v236 = vsel %vm204, %v189, 0
      %v239 = vsel %vm204, %v190, 0
      %v242 = vsel %vm204, %v192, 0
      %v245 = vsel %vm204, %v193, 0
      %v248 = vsel %vm204, %v195, 0
      %v251 = vsel %vm204, %v196, 0
      %vm253 = vcmask 1043456
      %v255 = vsel %vm253, %v203, 0
      %257 = vmatpush.msra.mxu0 0.0
      %258 = vmatpush.msra.mxu0 0.0
      %259 = vmatpush.msra.mxu0 0.0
      %260 = vmatpush.msra.mxu0 0.0
      %261 = vmatpush.msra.mxu0 0.0
      %262 = vmatpush.msra.mxu0 0.0
      %263 = vmatpush.msra.mxu0 0.0
      %264 = vmatpush.msra.mxu0 0.0
      %265 = vmatpush.msra.mxu0 0.0
      %266 = vmatpush.msra.mxu0 0.0
      %267 = vmatpush.msra.mxu0 0.0
      %268 = vmatpush.msra.mxu0 0.0
      %269 = vmatpush.msra.mxu0 0.0
      %270 = vmatpush.msra.mxu0 0.0
      %271 = vmatpush.msra.mxu0 0.0
      %272 = vmatpush.msra.mxu0 %v255
      %273 = vmatmul.f32.gmra.mxu0 %v206
      %v274 = vpop.f32.mrf.mxu0
      %v275 = vadd.f32 0.0, %v274
      %276 = vmatmul.f32.gmra.mxu0 %v209
      %v277 = vpop.f32.mrf.mxu0
      %v278 = vadd.f32 0.0, %v277
      %279 = vmatmul.f32.gmra.mxu0 %v212
      %v280 = vpop.f32.mrf.mxu0
      %v281 = vadd.f32 0.0, %v280
      %282 = vmatmul.f32.gmra.mxu0 %v215
      %v283 = vpop.f32.mrf.mxu0
      %v284 = vadd.f32 0.0, %v283
      %285 = vmatmul.f32.gmra.mxu0 %v218
      %v286 = vpop.f32.mrf.mxu0
      %v287 = vadd.f32 0.0, %v286
      %288 = vmatmul.f32.gmra.mxu0 %v221
      %v289 = vpop.f32.mrf.mxu0
      %v290 = vadd.f32 0.0, %v289
      %291 = vmatmul.f32.gmra.mxu0 %v224
      %v292 = vpop.f32.mrf.mxu0
      %v293 = vadd.f32 0.0, %v292
      %294 = vmatmul.f32.gmra.mxu0 %v227
      %v295 = vpop.f32.mrf.mxu0
      %v296 = vadd.f32 0.0, %v295
      %297 = vmatmul.f32.gmra.mxu0 %v230
      %v298 = vpop.f32.mrf.mxu0
      %v299 = vadd.f32 0.0, %v298
      %300 = vmatmul.f32.gmra.mxu0 %v233
      %v301 = vpop.f32.mrf.mxu0
      %v302 = vadd.f32 0.0, %v301
      %303 = vmatmul.f32.gmra.mxu0 %v236
      %v304 = vpop.f32.mrf.mxu0
      %v305 = vadd.f32 0.0, %v304
      %306 = vmatmul.f32.gmra.mxu0 %v239
      %v307 = vpop.f32.mrf.mxu0
      %v308 = vadd.f32 0.0, %v307
      %309 = vmatmul.f32.gmra.mxu0 %v242
      %v310 = vpop.f32.mrf.mxu0
      %v311 = vadd.f32 0.0, %v310
      %312 = vmatmul.f32.gmra.mxu0 %v245
      %v313 = vpop.f32.mrf.mxu0
      %v314 = vadd.f32 0.0, %v313
      %315 = vmatmul.f32.gmra.mxu0 %v248
      %v316 = vpop.f32.mrf.mxu0
      %v317 = vadd.f32 0.0, %v316
      %318 = vmatmul.f32.gmra.mxu0 %v251
      %v319 = vpop.f32.mrf.mxu0
      %v320 = vadd.f32 0.0, %v319
      %321 = vdwg.mxu0
      %v323 = vsel %vm204, %v171, 0
      %v326 = vsel %vm204, %v172, 0
      %v329 = vsel %vm253, %v201, 0
      %331 = vmatpush.msra.mxu0 0.0
      %332 = vmatpush.msra.mxu0 0.0
      %333 = vmatpush.msra.mxu0 0.0
      %334 = vmatpush.msra.mxu0 0.0
      %335 = vmatpush.msra.mxu0 0.0
      %336 = vmatpush.msra.mxu0 0.0
      %337 = vmatpush.msra.mxu0 0.0
      %338 = vmatpush.msra.mxu0 0.0
      %339 = vmatpush.msra.mxu0 0.0
      %340 = vmatpush.msra.mxu0 0.0
      %341 = vmatpush.msra.mxu0 0.0
      %342 = vmatpush.msra.mxu0 0.0
      %343 = vmatpush.msra.mxu0 0.0
      %344 = vmatpush.msra.mxu0 0.0
      %345 = vmatpush.msra.mxu0 0.0
      %346 = vmatpush.msra.mxu0 %v329
      %347 = vmatmul.f32.gmra.mxu0 %v323
      %v348 = vpop.f32.mrf.mxu0
      %v349 = vadd.f32 %v275, %v348
      %350 = vmatmul.f32.gmra.mxu0 %v326
      %v351 = vpop.f32.mrf.mxu0
      %v352 = vadd.f32 %v278, %v351
      %353 = vmatmul.f32.gmra.mxu0 %v206
      %v354 = vpop.f32.mrf.mxu0
      %v355 = vadd.f32 %v281, %v354
      %356 = vmatmul.f32.gmra.mxu0 %v209
      %v357 = vpop.f32.mrf.mxu0
      %v358 = vadd.f32 %v284, %v357
      %359 = vmatmul.f32.gmra.mxu0 %v212
      %v360 = vpop.f32.mrf.mxu0
      %v361 = vadd.f32 %v287, %v360
      %362 = vmatmul.f32.gmra.mxu0 %v215
      %v363 = vpop.f32.mrf.mxu0
      %v364 = vadd.f32 %v290, %v363
      %365 = vmatmul.f32.gmra.mxu0 %v218
      %v366 = vpop.f32.mrf.mxu0
      %v367 = vadd.f32 %v293, %v366
      %368 = vmatmul.f32.gmra.mxu0 %v221
      %v369 = vpop.f32.mrf.mxu0
      %v370 = vadd.f32 %v296, %v369
      %371 = vmatmul.f32.gmra.mxu0 %v224
      %v372 = vpop.f32.mrf.mxu0
      %v373 = vadd.f32 %v299, %v372
      %374 = vmatmul.f32.gmra.mxu0 %v227
      %v375 = vpop.f32.mrf.mxu0
      %v376 = vadd.f32 %v302, %v375
      %377 = vmatmul.f32.gmra.mxu0 %v230
      %v378 = vpop.f32.mrf.mxu0
      %v379 = vadd.f32 %v305, %v378
      %380 = vmatmul.f32.gmra.mxu0 %v233
      %v381 = vpop.f32.mrf.mxu0
      %v382 = vadd.f32 %v308, %v381
      %383 = vmatmul.f32.gmra.mxu0 %v236
      %v384 = vpop.f32.mrf.mxu0
      %v385 = vadd.f32 %v311, %v384
      %386 = vmatmul.f32.gmra.mxu0 %v239
      %v387 = vpop.f32.mrf.mxu0
      %v388 = vadd.f32 %v314, %v387
      %389 = vmatmul.f32.gmra.mxu0 %v242
      %v390 = vpop.f32.mrf.mxu0
      %v391 = vadd.f32 %v317, %v390
      %392 = vmatmul.f32.gmra.mxu0 %v245
      %v393 = vpop.f32.mrf.mxu0
      %v394 = vadd.f32 %v320, %v393
      %395 = vdwg.mxu0
      %s396 = scalar_lea.vmem %s1, 24
      %v397 = vld [vmem:[%s396] sm:$0xf]
      %v399 = vsel %vm204, %v198, 0
      %v402 = vsel %vm204, %v199, 0
      %v405 = vsel %vm253, %v397, 0
      %407 = vmatpush.msra.mxu0 0.0
      %408 = vmatpush.msra.mxu0 0.0
      %409 = vmatpush.msra.mxu0 0.0
      %410 = vmatpush.msra.mxu0 0.0
      %411 = vmatpush.msra.mxu0 0.0
      %412 = vmatpush.msra.mxu0 0.0
      %413 = vmatpush.msra.mxu0 0.0
      %414 = vmatpush.msra.mxu0 0.0
      %415 = vmatpush.msra.mxu0 0.0
      %416 = vmatpush.msra.mxu0 0.0
      %417 = vmatpush.msra.mxu0 0.0
      %418 = vmatpush.msra.mxu0 0.0
      %419 = vmatpush.msra.mxu0 0.0
      %420 = vmatpush.msra.mxu0 0.0
      %421 = vmatpush.msra.mxu0 0.0
      %422 = vmatpush.msra.mxu0 %v405
      %423 = vmatmul.f32.gmra.mxu0 %v212
      %v424 = vpop.f32.mrf.mxu0
      %v425 = vadd.f32 0.0, %v424
      %426 = vmatmul.f32.gmra.mxu0 %v215
      %v427 = vpop.f32.mrf.mxu0
      %v428 = vadd.f32 0.0, %v427
      %429 = vmatmul.f32.gmra.mxu0 %v218
      %v430 = vpop.f32.mrf.mxu0
      %v431 = vadd.f32 0.0, %v430
      %432 = vmatmul.f32.gmra.mxu0 %v221
      %v433 = vpop.f32.mrf.mxu0
      %v434 = vadd.f32 0.0, %v433
      %435 = vmatmul.f32.gmra.mxu0 %v224
      %v436 = vpop.f32.mrf.mxu0
      %v437 = vadd.f32 0.0, %v436
      %438 = vmatmul.f32.gmra.mxu0 %v227
      %v439 = vpop.f32.mrf.mxu0
      %v440 = vadd.f32 0.0, %v439
      %441 = vmatmul.f32.gmra.mxu0 %v230
      %v442 = vpop.f32.mrf.mxu0
      %v443 = vadd.f32 0.0, %v442
      %444 = vmatmul.f32.gmra.mxu0 %v233
      %v445 = vpop.f32.mrf.mxu0
      %v446 = vadd.f32 0.0, %v445
      %447 = vmatmul.f32.gmra.mxu0 %v236
      %v448 = vpop.f32.mrf.mxu0
      %v449 = vadd.f32 0.0, %v448
      %450 = vmatmul.f32.gmra.mxu0 %v239
      %v451 = vpop.f32.mrf.mxu0
      %v452 = vadd.f32 0.0, %v451
      %453 = vmatmul.f32.gmra.mxu0 %v242
      %v454 = vpop.f32.mrf.mxu0
      %v455 = vadd.f32 0.0, %v454
      %456 = vmatmul.f32.gmra.mxu0 %v245
      %v457 = vpop.f32.mrf.mxu0
      %v458 = vadd.f32 0.0, %v457
      %459 = vmatmul.f32.gmra.mxu0 %v248
      %v460 = vpop.f32.mrf.mxu0
      %v461 = vadd.f32 0.0, %v460
      %462 = vmatmul.f32.gmra.mxu0 %v251
      %v463 = vpop.f32.mrf.mxu0
      %v464 = vadd.f32 0.0, %v463
      %465 = vmatmul.f32.gmra.mxu0 %v399
      %v466 = vpop.f32.mrf.mxu0
      %v467 = vadd.f32 0.0, %v466
      %468 = vmatmul.f32.gmra.mxu0 %v402
      %v469 = vpop.f32.mrf.mxu0
      %v470 = vadd.f32 0.0, %v469
      %471 = vdwg.mxu0
      %v472 = vadd.f32 %v349, %v425
      %v473 = vadd.f32 %v352, %v428
      %v474 = vadd.f32 %v355, %v431
      %v475 = vadd.f32 %v358, %v434
      %v476 = vadd.f32 %v361, %v437
      %v477 = vadd.f32 %v364, %v440
      %v478 = vadd.f32 %v367, %v443
      %v479 = vadd.f32 %v370, %v446
      %v480 = vadd.f32 %v373, %v449
      %v481 = vadd.f32 %v376, %v452
      %v482 = vadd.f32 %v379, %v455
      %v483 = vadd.f32 %v382, %v458
      %v484 = vadd.f32 %v385, %v461
      %v485 = vadd.f32 %v388, %v464
      %v486 = vadd.f32 %v391, %v467
      %v487 = vadd.f32 %v394, %v470
      %vm498 = vcmask 1046528
      %v499 = vrot.slane %v171, 1
      %v500 = vrot.slane %v172, 1
      %v501 = vsel %vm498, %v499, %v500
      %v502 = vrot.slane %v173, 1
      %v503 = vsel %vm498, %v500, %v502
      %v504 = vrot.slane %v174, 1
      %v505 = vrot.slane %v175, 1
      %v506 = vsel %vm498, %v504, %v505
      %v507 = vrot.slane %v176, 1
      %v508 = vsel %vm498, %v505, %v507
      %v509 = vrot.slane %v177, 1
      %v510 = vrot.slane %v178, 1
      %v511 = vsel %vm498, %v509, %v510
      %v512 = vrot.slane %v179, 1
      %v513 = vsel %vm498, %v510, %v512
      %v514 = vrot.slane %v180, 1
      %v515 = vrot.slane %v181, 1
      %v516 = vsel %vm498, %v514, %v515
      %v517 = vrot.slane %v182, 1
      %v518 = vsel %vm498, %v515, %v517
      %v519 = vrot.slane %v183, 1
      %v520 = vrot.slane %v184, 1
      %v521 = vsel %vm498, %v519, %v520
      %v522 = vrot.slane %v185, 1
      %v523 = vsel %vm498, %v520, %v522
      %v524 = vrot.slane %v186, 1
      %v525 = vrot.slane %v187, 1
      %v526 = vsel %vm498, %v524, %v525
      %v527 = vrot.slane %v188, 1
      %v528 = vsel %vm498, %v525, %v527
      %v529 = vrot.slane %v189, 1
      %v530 = vrot.slane %v190, 1
      %v531 = vsel %vm498, %v529, %v530
      %v532 = vrot.slane %v191, 1
      %v533 = vsel %vm498, %v530, %v532
      %v534 = vrot.slane %v192, 1
      %v535 = vrot.slane %v193, 1
      %v536 = vsel %vm498, %v534, %v535
      %v537 = vrot.slane %v194, 1
      %v538 = vsel %vm498, %v535, %v537
      %v539 = vrot.slane %v195, 1
      %v540 = vrot.slane %v196, 1
      %v541 = vsel %vm498, %v539, %v540
      %v542 = vrot.slane %v197, 1
      %v543 = vsel %vm498, %v540, %v542
      %v544 = vrot.slane %v198, 1
      %v545 = vrot.slane %v199, 1
      %v546 = vsel %vm498, %v544, %v545
      %v547 = vrot.slane %v200, 1
      %v548 = vsel %vm498, %v545, %v547
      %s549 = scalar_lea.vmem %s1, 4
      %v550 = vld [vmem:[%s549] sm:$0xf]
      %v551 = vsel %vm204, %v501, 0
      %v553 = vsel %vm204, %v503, 0
      %v555 = vsel %vm204, %v506, 0
      %v557 = vsel %vm204, %v508, 0
      %v559 = vsel %vm204, %v511, 0
      %v561 = vsel %vm204, %v513, 0
      %v563 = vsel %vm204, %v516, 0
      %v565 = vsel %vm204, %v518, 0
      %v567 = vsel %vm204, %v521, 0
      %v569 = vsel %vm204, %v523, 0
      %v571 = vsel %vm204, %v526, 0
      %v573 = vsel %vm204, %v528, 0
      %v575 = vsel %vm204, %v531, 0
      %v577 = vsel %vm204, %v533, 0
      %v579 = vsel %vm204, %v536, 0
      %v581 = vsel %vm204, %v538, 0
      %v584 = vsel %vm253, %v550, 0
      %586 = vmatpush.msra.mxu0 0.0
      %587 = vmatpush.msra.mxu0 0.0
      %588 = vmatpush.msra.mxu0 0.0
      %589 = vmatpush.msra.mxu0 0.0
      %590 = vmatpush.msra.mxu0 0.0
      %591 = vmatpush.msra.mxu0 0.0
      %592 = vmatpush.msra.mxu0 0.0
      %593 = vmatpush.msra.mxu0 0.0
      %594 = vmatpush.msra.mxu0 0.0
      %595 = vmatpush.msra.mxu0 0.0
      %596 = vmatpush.msra.mxu0 0.0
      %597 = vmatpush.msra.mxu0 0.0
      %598 = vmatpush.msra.mxu0 0.0
      %599 = vmatpush.msra.mxu0 0.0
      %600 = vmatpush.msra.mxu0 0.0
      %601 = vmatpush.msra.mxu0 %v584
      %602 = vmatmul.f32.gmra.mxu0 %v551
      %v603 = vpop.f32.mrf.mxu0
      %v604 = vadd.f32 0.0, %v603
      %605 = vmatmul.f32.gmra.mxu0 %v553
      %v606 = vpop.f32.mrf.mxu0
      %v607 = vadd.f32 0.0, %v606
      %608 = vmatmul.f32.gmra.mxu0 %v555
      %v609 = vpop.f32.mrf.mxu0
      %v610 = vadd.f32 0.0, %v609
      %611 = vmatmul.f32.gmra.mxu0 %v557
      %v612 = vpop.f32.mrf.mxu0
      %v613 = vadd.f32 0.0, %v612
      %614 = vmatmul.f32.gmra.mxu0 %v559
      %v615 = vpop.f32.mrf.mxu0
      %v616 = vadd.f32 0.0, %v615
      %617 = vmatmul.f32.gmra.mxu0 %v561
      %v618 = vpop.f32.mrf.mxu0
      %v619 = vadd.f32 0.0, %v618
      %620 = vmatmul.f32.gmra.mxu0 %v563
      %v621 = vpop.f32.mrf.mxu0
      %v622 = vadd.f32 0.0, %v621
      %623 = vmatmul.f32.gmra.mxu0 %v565
      %v624 = vpop.f32.mrf.mxu0
      %v625 = vadd.f32 0.0, %v624
      %626 = vmatmul.f32.gmra.mxu0 %v567
      %v627 = vpop.f32.mrf.mxu0
      %v628 = vadd.f32 0.0, %v627
      %629 = vmatmul.f32.gmra.mxu0 %v569
      %v630 = vpop.f32.mrf.mxu0
      %v631 = vadd.f32 0.0, %v630
      %632 = vmatmul.f32.gmra.mxu0 %v571
      %v633 = vpop.f32.mrf.mxu0
      %v634 = vadd.f32 0.0, %v633
      %635 = vmatmul.f32.gmra.mxu0 %v573
      %v636 = vpop.f32.mrf.mxu0
      %v637 = vadd.f32 0.0, %v636
      %638 = vmatmul.f32.gmra.mxu0 %v575
      %v639 = vpop.f32.mrf.mxu0
      %v640 = vadd.f32 0.0, %v639
      %641 = vmatmul.f32.gmra.mxu0 %v577
      %v642 = vpop.f32.mrf.mxu0
      %v643 = vadd.f32 0.0, %v642
      %644 = vmatmul.f32.gmra.mxu0 %v579
      %v645 = vpop.f32.mrf.mxu0
      %v646 = vadd.f32 0.0, %v645
      %647 = vmatmul.f32.gmra.mxu0 %v581
      %v648 = vpop.f32.mrf.mxu0
      %v649 = vadd.f32 0.0, %v648
      %650 = vdwg.mxu0
      %v651 = vadd.f32 %v472, %v604
      %v652 = vadd.f32 %v473, %v607
      %v653 = vadd.f32 %v474, %v610
      %v654 = vadd.f32 %v475, %v613
      %v655 = vadd.f32 %v476, %v616
      %v656 = vadd.f32 %v477, %v619
      %v657 = vadd.f32 %v478, %v622
      %v658 = vadd.f32 %v479, %v625
      %v659 = vadd.f32 %v480, %v628
      %v660 = vadd.f32 %v481, %v631
      %v661 = vadd.f32 %v482, %v634
      %v662 = vadd.f32 %v483, %v637
      %v663 = vadd.f32 %v484, %v640
      %v664 = vadd.f32 %v485, %v643
      %v665 = vadd.f32 %v486, %v646
      %v666 = vadd.f32 %v487, %v649
      %s667 = scalar_lea.vmem %s1, 16
      %v668 = vld [vmem:[%s667] sm:$0xf]
      %v669 = vsel %vm204, %v541, 0
      %v671 = vsel %vm204, %v543, 0
      %v674 = vsel %vm253, %v668, 0
      %676 = vmatpush.msra.mxu0 0.0
      %677 = vmatpush.msra.mxu0 0.0
      %678 = vmatpush.msra.mxu0 0.0
      %679 = vmatpush.msra.mxu0 0.0
      %680 = vmatpush.msra.mxu0 0.0
      %681 = vmatpush.msra.mxu0 0.0
      %682 = vmatpush.msra.mxu0 0.0
      %683 = vmatpush.msra.mxu0 0.0
      %684 = vmatpush.msra.mxu0 0.0
      %685 = vmatpush.msra.mxu0 0.0
      %686 = vmatpush.msra.mxu0 0.0
      %687 = vmatpush.msra.mxu0 0.0
      %688 = vmatpush.msra.mxu0 0.0
      %689 = vmatpush.msra.mxu0 0.0
      %690 = vmatpush.msra.mxu0 0.0
      %691 = vmatpush.msra.mxu0 %v674
      %692 = vmatmul.f32.gmra.mxu0 %v555
      %v693 = vpop.f32.mrf.mxu0
      %v694 = vadd.f32 0.0, %v693
      %695 = vmatmul.f32.gmra.mxu0 %v557
      %v696 = vpop.f32.mrf.mxu0
      %v697 = vadd.f32 0.0, %v696
      %698 = vmatmul.f32.gmra.mxu0 %v559
      %v699 = vpop.f32.mrf.mxu0
      %v700 = vadd.f32 0.0, %v699
      %701 = vmatmul.f32.gmra.mxu0 %v561
      %v702 = vpop.f32.mrf.mxu0
      %v703 = vadd.f32 0.0, %v702
      %704 = vmatmul.f32.gmra.mxu0 %v563
      %v705 = vpop.f32.mrf.mxu0
      %v706 = vadd.f32 0.0, %v705
      %707 = vmatmul.f32.gmra.mxu0 %v565
      %v708 = vpop.f32.mrf.mxu0
      %v709 = vadd.f32 0.0, %v708
      %710 = vmatmul.f32.gmra.mxu0 %v567
      %v711 = vpop.f32.mrf.mxu0
      %v712 = vadd.f32 0.0, %v711
      %713 = vmatmul.f32.gmra.mxu0 %v569
      %v714 = vpop.f32.mrf.mxu0
      %v715 = vadd.f32 0.0, %v714
      %716 = vmatmul.f32.gmra.mxu0 %v571
      %v717 = vpop.f32.mrf.mxu0
      %v718 = vadd.f32 0.0, %v717
      %719 = vmatmul.f32.gmra.mxu0 %v573
      %v720 = vpop.f32.mrf.mxu0
      %v721 = vadd.f32 0.0, %v720
      %722 = vmatmul.f32.gmra.mxu0 %v575
      %v723 = vpop.f32.mrf.mxu0
      %v724 = vadd.f32 0.0, %v723
      %725 = vmatmul.f32.gmra.mxu0 %v577
      %v726 = vpop.f32.mrf.mxu0
      %v727 = vadd.f32 0.0, %v726
      %728 = vmatmul.f32.gmra.mxu0 %v579
      %v729 = vpop.f32.mrf.mxu0
      %v730 = vadd.f32 0.0, %v729
      %731 = vmatmul.f32.gmra.mxu0 %v581
      %v732 = vpop.f32.mrf.mxu0
      %v733 = vadd.f32 0.0, %v732
      %734 = vmatmul.f32.gmra.mxu0 %v669
      %v735 = vpop.f32.mrf.mxu0
      %v736 = vadd.f32 0.0, %v735
      %737 = vmatmul.f32.gmra.mxu0 %v671
      %v738 = vpop.f32.mrf.mxu0
      %v739 = vadd.f32 0.0, %v738
      %740 = vdwg.mxu0
      %v741 = vadd.f32 %v651, %v694
      %v742 = vadd.f32 %v652, %v697
      %v743 = vadd.f32 %v653, %v700
      %v744 = vadd.f32 %v654, %v703
      %v745 = vadd.f32 %v655, %v706
      %v746 = vadd.f32 %v656, %v709
      %v747 = vadd.f32 %v657, %v712
      %v748 = vadd.f32 %v658, %v715
      %v749 = vadd.f32 %v659, %v718
      %v750 = vadd.f32 %v660, %v721
      %v751 = vadd.f32 %v661, %v724
      %v752 = vadd.f32 %v662, %v727
      %v753 = vadd.f32 %v663, %v730
      %v754 = vadd.f32 %v664, %v733
      %v755 = vadd.f32 %v665, %v736
      %v756 = vadd.f32 %v666, %v739
      %s757 = scalar_lea.vmem %s1, 28
      %v758 = vld [vmem:[%s757] sm:$0xf]
      %v759 = vsel %vm204, %v546, 0
      %v761 = vsel %vm204, %v548, 0
      %v764 = vsel %vm253, %v758, 0
      %766 = vmatpush.msra.mxu0 0.0
      %767 = vmatpush.msra.mxu0 0.0
      %768 = vmatpush.msra.mxu0 0.0
      %769 = vmatpush.msra.mxu0 0.0
      %770 = vmatpush.msra.mxu0 0.0
      %771 = vmatpush.msra.mxu0 0.0
      %772 = vmatpush.msra.mxu0 0.0
      %773 = vmatpush.msra.mxu0 0.0
      %774 = vmatpush.msra.mxu0 0.0
      %775 = vmatpush.msra.mxu0 0.0
      %776 = vmatpush.msra.mxu0 0.0
      %777 = vmatpush.msra.mxu0 0.0
      %778 = vmatpush.msra.mxu0 0.0
      %779 = vmatpush.msra.mxu0 0.0
      %780 = vmatpush.msra.mxu0 0.0
      %781 = vmatpush.msra.mxu0 %v764
      %782 = vmatmul.f32.gmra.mxu0 %v559
      %v783 = vpop.f32.mrf.mxu0
      %v784 = vadd.f32 0.0, %v783
      %785 = vmatmul.f32.gmra.mxu0 %v561
      %v786 = vpop.f32.mrf.mxu0
      %v787 = vadd.f32 0.0, %v786
      %788 = vmatmul.f32.gmra.mxu0 %v563
      %v789 = vpop.f32.mrf.mxu0
      %v790 = vadd.f32 0.0, %v789
      %791 = vmatmul.f32.gmra.mxu0 %v565
      %v792 = vpop.f32.mrf.mxu0
      %v793 = vadd.f32 0.0, %v792
      %794 = vmatmul.f32.gmra.mxu0 %v567
      %v795 = vpop.f32.mrf.mxu0
      %v796 = vadd.f32 0.0, %v795
      %797 = vmatmul.f32.gmra.mxu0 %v569
      %v798 = vpop.f32.mrf.mxu0
      %v799 = vadd.f32 0.0, %v798
      %800 = vmatmul.f32.gmra.mxu0 %v571
      %v801 = vpop.f32.mrf.mxu0
      %v802 = vadd.f32 0.0, %v801
      %803 = vmatmul.f32.gmra.mxu0 %v573
      %v804 = vpop.f32.mrf.mxu0
      %v805 = vadd.f32 0.0, %v804
      %806 = vmatmul.f32.gmra.mxu0 %v575
      %v807 = vpop.f32.mrf.mxu0
      %v808 = vadd.f32 0.0, %v807
      %809 = vmatmul.f32.gmra.mxu0 %v577
      %v810 = vpop.f32.mrf.mxu0
      %v811 = vadd.f32 0.0, %v810
      %812 = vmatmul.f32.gmra.mxu0 %v579
      %v813 = vpop.f32.mrf.mxu0
      %v814 = vadd.f32 0.0, %v813
      %815 = vmatmul.f32.gmra.mxu0 %v581
      %v816 = vpop.f32.mrf.mxu0
      %v817 = vadd.f32 0.0, %v816
      %818 = vmatmul.f32.gmra.mxu0 %v669
      %v819 = vpop.f32.mrf.mxu0
      %v820 = vadd.f32 0.0, %v819
      %821 = vmatmul.f32.gmra.mxu0 %v671
      %v822 = vpop.f32.mrf.mxu0
      %v823 = vadd.f32 0.0, %v822
      %824 = vmatmul.f32.gmra.mxu0 %v759
      %v825 = vpop.f32.mrf.mxu0
      %v826 = vadd.f32 0.0, %v825
      %827 = vmatmul.f32.gmra.mxu0 %v761
      %v828 = vpop.f32.mrf.mxu0
      %v829 = vadd.f32 0.0, %v828
      %830 = vdwg.mxu0
      %v831 = vadd.f32 %v741, %v784
      %v832 = vadd.f32 %v742, %v787
      %v833 = vadd.f32 %v743, %v790
      %v834 = vadd.f32 %v744, %v793
      %v835 = vadd.f32 %v745, %v796
      %v836 = vadd.f32 %v746, %v799
      %v837 = vadd.f32 %v747, %v802
      %v838 = vadd.f32 %v748, %v805
      %v839 = vadd.f32 %v749, %v808
      %v840 = vadd.f32 %v750, %v811
      %v841 = vadd.f32 %v751, %v814
      %v842 = vadd.f32 %v752, %v817
      %v843 = vadd.f32 %v753, %v820
      %v844 = vadd.f32 %v754, %v823
      %v845 = vadd.f32 %v755, %v826
      %v846 = vadd.f32 %v756, %v829
      %vm847 = vcmask 1045504
      %v848 = vrot.slane %v171, 2
      %v849 = vrot.slane %v172, 2
      %v850 = vsel %vm847, %v848, %v849
      %v851 = vrot.slane %v173, 2
      %v852 = vsel %vm847, %v849, %v851
      %v853 = vrot.slane %v174, 2
      %v854 = vrot.slane %v175, 2
      %v855 = vsel %vm847, %v853, %v854
      %v856 = vrot.slane %v176, 2
      %v857 = vsel %vm847, %v854, %v856
      %v858 = vrot.slane %v177, 2
      %v859 = vrot.slane %v178, 2
      %v860 = vsel %vm847, %v858, %v859
      %v861 = vrot.slane %v179, 2
      %v862 = vsel %vm847, %v859, %v861
      %v863 = vrot.slane %v180, 2
      %v864 = vrot.slane %v181, 2
      %v865 = vsel %vm847, %v863, %v864
      %v866 = vrot.slane %v182, 2
      %v867 = vsel %vm847, %v864, %v866
      %v868 = vrot.slane %v183, 2
      %v869 = vrot.slane %v184, 2
      %v870 = vsel %vm847, %v868, %v869
      %v871 = vrot.slane %v185, 2
      %v872 = vsel %vm847, %v869, %v871
      %v873 = vrot.slane %v186, 2
      %v874 = vrot.slane %v187, 2
      %v875 = vsel %vm847, %v873, %v874
      %v876 = vrot.slane %v188, 2
      %v877 = vsel %vm847, %v874, %v876
      %v878 = vrot.slane %v189, 2
      %v879 = vrot.slane %v190, 2
      %v880 = vsel %vm847, %v878, %v879
      %v881 = vrot.slane %v191, 2
      %v882 = vsel %vm847, %v879, %v881
      %v883 = vrot.slane %v192, 2
      %v884 = vrot.slane %v193, 2
      %v885 = vsel %vm847, %v883, %v884
      %v886 = vrot.slane %v194, 2
      %v887 = vsel %vm847, %v884, %v886
      %v888 = vrot.slane %v195, 2
      %v889 = vrot.slane %v196, 2
      %v890 = vsel %vm847, %v888, %v889
      %v891 = vrot.slane %v197, 2
      %v892 = vsel %vm847, %v889, %v891
      %v893 = vrot.slane %v198, 2
      %v894 = vrot.slane %v199, 2
      %v895 = vsel %vm847, %v893, %v894
      %v896 = vrot.slane %v200, 2
      %v897 = vsel %vm847, %v894, %v896
      %s898 = scalar_lea.vmem %s1, 8
      %v899 = vld [vmem:[%s898] sm:$0xf]
      %v900 = vsel %vm204, %v850, 0
      %v902 = vsel %vm204, %v852, 0
      %v904 = vsel %vm204, %v855, 0
      %v906 = vsel %vm204, %v857, 0
      %v908 = vsel %vm204, %v860, 0
      %v910 = vsel %vm204, %v862, 0
      %v912 = vsel %vm204, %v865, 0
      %v914 = vsel %vm204, %v867, 0
      %v916 = vsel %vm204, %v870, 0
      %v918 = vsel %vm204, %v872, 0
      %v920 = vsel %vm204, %v875, 0
      %v922 = vsel %vm204, %v877, 0
      %v924 = vsel %vm204, %v880, 0
      %v926 = vsel %vm204, %v882, 0
      %v928 = vsel %vm204, %v885, 0
      %v930 = vsel %vm204, %v887, 0
      %v933 = vsel %vm253, %v899, 0
      %935 = vmatpush.msra.mxu0 0.0
      %936 = vmatpush.msra.mxu0 0.0
      %937 = vmatpush.msra.mxu0 0.0
      %938 = vmatpush.msra.mxu0 0.0
      %939 = vmatpush.msra.mxu0 0.0
      %940 = vmatpush.msra.mxu0 0.0
      %941 = vmatpush.msra.mxu0 0.0
      %942 = vmatpush.msra.mxu0 0.0
      %943 = vmatpush.msra.mxu0 0.0
      %944 = vmatpush.msra.mxu0 0.0
      %945 = vmatpush.msra.mxu0 0.0
      %946 = vmatpush.msra.mxu0 0.0
      %947 = vmatpush.msra.mxu0 0.0
      %948 = vmatpush.msra.mxu0 0.0
      %949 = vmatpush.msra.mxu0 0.0
      %950 = vmatpush.msra.mxu0 %v933
      %951 = vmatmul.f32.gmra.mxu0 %v900
      %v952 = vpop.f32.mrf.mxu0
      %v953 = vadd.f32 0.0, %v952
      %954 = vmatmul.f32.gmra.mxu0 %v902
      %v955 = vpop.f32.mrf.mxu0
      %v956 = vadd.f32 0.0, %v955
      %957 = vmatmul.f32.gmra.mxu0 %v904
      %v958 = vpop.f32.mrf.mxu0
      %v959 = vadd.f32 0.0, %v958
      %960 = vmatmul.f32.gmra.mxu0 %v906
      %v961 = vpop.f32.mrf.mxu0
      %v962 = vadd.f32 0.0, %v961
      %963 = vmatmul.f32.gmra.mxu0 %v908
      %v964 = vpop.f32.mrf.mxu0
      %v965 = vadd.f32 0.0, %v964
      %966 = vmatmul.f32.gmra.mxu0 %v910
      %v967 = vpop.f32.mrf.mxu0
      %v968 = vadd.f32 0.0, %v967
      %969 = vmatmul.f32.gmra.mxu0 %v912
      %v970 = vpop.f32.mrf.mxu0
      %v971 = vadd.f32 0.0, %v970
      %972 = vmatmul.f32.gmra.mxu0 %v914
      %v973 = vpop.f32.mrf.mxu0
      %v974 = vadd.f32 0.0, %v973
      %975 = vmatmul.f32.gmra.mxu0 %v916
      %v976 = vpop.f32.mrf.mxu0
      %v977 = vadd.f32 0.0, %v976
      %978 = vmatmul.f32.gmra.mxu0 %v918
      %v979 = vpop.f32.mrf.mxu0
      %v980 = vadd.f32 0.0, %v979
      %981 = vmatmul.f32.gmra.mxu0 %v920
      %v982 = vpop.f32.mrf.mxu0
      %v983 = vadd.f32 0.0, %v982
      %984 = vmatmul.f32.gmra.mxu0 %v922
      %v985 = vpop.f32.mrf.mxu0
      %v986 = vadd.f32 0.0, %v985
      %987 = vmatmul.f32.gmra.mxu0 %v924
      %v988 = vpop.f32.mrf.mxu0
      %v989 = vadd.f32 0.0, %v988
      %990 = vmatmul.f32.gmra.mxu0 %v926
      %v991 = vpop.f32.mrf.mxu0
      %v992 = vadd.f32 0.0, %v991
      %993 = vmatmul.f32.gmra.mxu0 %v928
      %v994 = vpop.f32.mrf.mxu0
      %v995 = vadd.f32 0.0, %v994
      %996 = vmatmul.f32.gmra.mxu0 %v930
      %v997 = vpop.f32.mrf.mxu0
      %v998 = vadd.f32 0.0, %v997
      %999 = vdwg.mxu0
      %v1000 = vadd.f32 %v831, %v953
      %v1001 = vadd.f32 %v832, %v956
      %v1002 = vadd.f32 %v833, %v959
      %v1003 = vadd.f32 %v834, %v962
      %v1004 = vadd.f32 %v835, %v965
      %v1005 = vadd.f32 %v836, %v968
      %v1006 = vadd.f32 %v837, %v971
      %v1007 = vadd.f32 %v838, %v974
      %v1008 = vadd.f32 %v839, %v977
      %v1009 = vadd.f32 %v840, %v980
      %v1010 = vadd.f32 %v841, %v983
      %v1011 = vadd.f32 %v842, %v986
      %v1012 = vadd.f32 %v843, %v989
      %v1013 = vadd.f32 %v844, %v992
      %v1014 = vadd.f32 %v845, %v995
      %v1015 = vadd.f32 %v846, %v998
      %s1016 = scalar_lea.vmem %s1, 20
      %v1017 = vld [vmem:[%s1016] sm:$0xf]
      %v1018 = vsel %vm204, %v890, 0
      %v1020 = vsel %vm204, %v892, 0
      %v1023 = vsel %vm253, %v1017, 0
      %1025 = vmatpush.msra.mxu0 0.0
      %1026 = vmatpush.msra.mxu0 0.0
      %1027 = vmatpush.msra.mxu0 0.0
      %1028 = vmatpush.msra.mxu0 0.0
      %1029 = vmatpush.msra.mxu0 0.0
      %1030 = vmatpush.msra.mxu0 0.0
      %1031 = vmatpush.msra.mxu0 0.0
      %1032 = vmatpush.msra.mxu0 0.0
      %1033 = vmatpush.msra.mxu0 0.0
      %1034 = vmatpush.msra.mxu0 0.0
      %1035 = vmatpush.msra.mxu0 0.0
      %1036 = vmatpush.msra.mxu0 0.0
      %1037 = vmatpush.msra.mxu0 0.0
      %1038 = vmatpush.msra.mxu0 0.0
      %1039 = vmatpush.msra.mxu0 0.0
      %1040 = vmatpush.msra.mxu0 %v1023
      %1041 = vmatmul.f32.gmra.mxu0 %v904
      %v1042 = vpop.f32.mrf.mxu0
      %v1043 = vadd.f32 0.0, %v1042
      %1044 = vmatmul.f32.gmra.mxu0 %v906
      %v1045 = vpop.f32.mrf.mxu0
      %v1046 = vadd.f32 0.0, %v1045
      %1047 = vmatmul.f32.gmra.mxu0 %v908
      %v1048 = vpop.f32.mrf.mxu0
      %v1049 = vadd.f32 0.0, %v1048
      %1050 = vmatmul.f32.gmra.mxu0 %v910
      %v1051 = vpop.f32.mrf.mxu0
      %v1052 = vadd.f32 0.0, %v1051
      %1053 = vmatmul.f32.gmra.mxu0 %v912
      %v1054 = vpop.f32.mrf.mxu0
      %v1055 = vadd.f32 0.0, %v1054
      %1056 = vmatmul.f32.gmra.mxu0 %v914
      %v1057 = vpop.f32.mrf.mxu0
      %v1058 = vadd.f32 0.0, %v1057
      %1059 = vmatmul.f32.gmra.mxu0 %v916
      %v1060 = vpop.f32.mrf.mxu0
      %v1061 = vadd.f32 0.0, %v1060
      %1062 = vmatmul.f32.gmra.mxu0 %v918
      %v1063 = vpop.f32.mrf.mxu0
      %v1064 = vadd.f32 0.0, %v1063
      %1065 = vmatmul.f32.gmra.mxu0 %v920
      %v1066 = vpop.f32.mrf.mxu0
      %v1067 = vadd.f32 0.0, %v1066
      %1068 = vmatmul.f32.gmra.mxu0 %v922
      %v1069 = vpop.f32.mrf.mxu0
      %v1070 = vadd.f32 0.0, %v1069
      %1071 = vmatmul.f32.gmra.mxu0 %v924
      %v1072 = vpop.f32.mrf.mxu0
      %v1073 = vadd.f32 0.0, %v1072
      %1074 = vmatmul.f32.gmra.mxu0 %v926
      %v1075 = vpop.f32.mrf.mxu0
      %v1076 = vadd.f32 0.0, %v1075
      %1077 = vmatmul.f32.gmra.mxu0 %v928
      %v1078 = vpop.f32.mrf.mxu0
      %v1079 = vadd.f32 0.0, %v1078
      %1080 = vmatmul.f32.gmra.mxu0 %v930
      %v1081 = vpop.f32.mrf.mxu0
      %v1082 = vadd.f32 0.0, %v1081
      %1083 = vmatmul.f32.gmra.mxu0 %v1018
      %v1084 = vpop.f32.mrf.mxu0
      %v1085 = vadd.f32 0.0, %v1084
      %1086 = vmatmul.f32.gmra.mxu0 %v1020
      %v1087 = vpop.f32.mrf.mxu0
      %v1088 = vadd.f32 0.0, %v1087
      %1089 = vdwg.mxu0
      %v1090 = vadd.f32 %v1000, %v1043
      %v1091 = vadd.f32 %v1001, %v1046
      %v1092 = vadd.f32 %v1002, %v1049
      %v1093 = vadd.f32 %v1003, %v1052
      %v1094 = vadd.f32 %v1004, %v1055
      %v1095 = vadd.f32 %v1005, %v1058
      %v1096 = vadd.f32 %v1006, %v1061
      %v1097 = vadd.f32 %v1007, %v1064
      %v1098 = vadd.f32 %v1008, %v1067
      %v1099 = vadd.f32 %v1009, %v1070
      %v1100 = vadd.f32 %v1010, %v1073
      %v1101 = vadd.f32 %v1011, %v1076
      %v1102 = vadd.f32 %v1012, %v1079
      %v1103 = vadd.f32 %v1013, %v1082
      %v1104 = vadd.f32 %v1014, %v1085
      %v1105 = vadd.f32 %v1015, %v1088
      %s1106 = scalar_lea.vmem %s1, 32
      %v1107 = vld [vmem:[%s1106] sm:$0xf]
      %v1108 = vsel %vm204, %v895, 0
      %v1110 = vsel %vm204, %v897, 0
      %v1113 = vsel %vm253, %v1107, 0
      %1115 = vmatpush.msra.mxu0 0.0
      %1116 = vmatpush.msra.mxu0 0.0
      %1117 = vmatpush.msra.mxu0 0.0
      %1118 = vmatpush.msra.mxu0 0.0
      %1119 = vmatpush.msra.mxu0 0.0
      %1120 = vmatpush.msra.mxu0 0.0
      %1121 = vmatpush.msra.mxu0 0.0
      %1122 = vmatpush.msra.mxu0 0.0
      %1123 = vmatpush.msra.mxu0 0.0
      %1124 = vmatpush.msra.mxu0 0.0
      %1125 = vmatpush.msra.mxu0 0.0
      %1126 = vmatpush.msra.mxu0 0.0
      %1127 = vmatpush.msra.mxu0 0.0
      %1128 = vmatpush.msra.mxu0 0.0
      %1129 = vmatpush.msra.mxu0 0.0
      %1130 = vmatpush.msra.mxu0 %v1113
      %1131 = vmatmul.f32.gmra.mxu0 %v908
      %v1132 = vpop.f32.mrf.mxu0
      %v1133 = vadd.f32 0.0, %v1132
      %1134 = vmatmul.f32.gmra.mxu0 %v910
      %v1135 = vpop.f32.mrf.mxu0
      %v1136 = vadd.f32 0.0, %v1135
      %1137 = vmatmul.f32.gmra.mxu0 %v912
      %v1138 = vpop.f32.mrf.mxu0
      %v1139 = vadd.f32 0.0, %v1138
      %1140 = vmatmul.f32.gmra.mxu0 %v914
      %v1141 = vpop.f32.mrf.mxu0
      %v1142 = vadd.f32 0.0, %v1141
      %1143 = vmatmul.f32.gmra.mxu0 %v916
      %v1144 = vpop.f32.mrf.mxu0
      %v1145 = vadd.f32 0.0, %v1144
      %1146 = vmatmul.f32.gmra.mxu0 %v918
      %v1147 = vpop.f32.mrf.mxu0
      %v1148 = vadd.f32 0.0, %v1147
      %1149 = vmatmul.f32.gmra.mxu0 %v920
      %v1150 = vpop.f32.mrf.mxu0
      %v1151 = vadd.f32 0.0, %v1150
      %1152 = vmatmul.f32.gmra.mxu0 %v922
      %v1153 = vpop.f32.mrf.mxu0
      %v1154 = vadd.f32 0.0, %v1153
      %1155 = vmatmul.f32.gmra.mxu0 %v924
      %v1156 = vpop.f32.mrf.mxu0
      %v1157 = vadd.f32 0.0, %v1156
      %1158 = vmatmul.f32.gmra.mxu0 %v926
      %v1159 = vpop.f32.mrf.mxu0
      %v1160 = vadd.f32 0.0, %v1159
      %1161 = vmatmul.f32.gmra.mxu0 %v928
      %v1162 = vpop.f32.mrf.mxu0
      %v1163 = vadd.f32 0.0, %v1162
      %1164 = vmatmul.f32.gmra.mxu0 %v930
      %v1165 = vpop.f32.mrf.mxu0
      %v1166 = vadd.f32 0.0, %v1165
      %1167 = vmatmul.f32.gmra.mxu0 %v1018
      %v1168 = vpop.f32.mrf.mxu0
      %v1169 = vadd.f32 0.0, %v1168
      %1170 = vmatmul.f32.gmra.mxu0 %v1020
      %v1171 = vpop.f32.mrf.mxu0
      %v1172 = vadd.f32 0.0, %v1171
      %1173 = vmatmul.f32.gmra.mxu0 %v1108
      %v1174 = vpop.f32.mrf.mxu0
      %v1175 = vadd.f32 0.0, %v1174
      %1176 = vmatmul.f32.gmra.mxu0 %v1110
      %v1177 = vpop.f32.mrf.mxu0
      %v1178 = vadd.f32 0.0, %v1177
      %1179 = vdwg.mxu0
      %v1180 = vadd.f32 %v1090, %v1133
      %v1181 = vadd.f32 %v1091, %v1136
      %v1182 = vadd.f32 %v1092, %v1139
      %v1183 = vadd.f32 %v1093, %v1142
      %v1184 = vadd.f32 %v1094, %v1145
      %v1185 = vadd.f32 %v1095, %v1148
      %v1186 = vadd.f32 %v1096, %v1151
      %v1187 = vadd.f32 %v1097, %v1154
      %v1188 = vadd.f32 %v1098, %v1157
      %v1189 = vadd.f32 %v1099, %v1160
      %v1190 = vadd.f32 %v1100, %v1163
      %v1191 = vadd.f32 %v1101, %v1166
      %v1192 = vadd.f32 %v1102, %v1169
      %v1193 = vadd.f32 %v1103, %v1172
      %v1194 = vadd.f32 %v1104, %v1175
      %v1195 = vadd.f32 %v1105, %v1178
      %v1196 = vld [vmem:[%s2] sm:$0x1]
      %v1198 = vperm.slane %v1196, 0
      %v1200 = vadd.f32 %v1180, %v1198
      %v1201 = vadd.f32 %v1181, %v1198
      %v1202 = vadd.f32 %v1182, %v1198
      %v1203 = vadd.f32 %v1183, %v1198
      %v1204 = vadd.f32 %v1184, %v1198
      %v1205 = vadd.f32 %v1185, %v1198
      %v1206 = vadd.f32 %v1186, %v1198
      %v1207 = vadd.f32 %v1187, %v1198
      %v1208 = vadd.f32 %v1188, %v1198
      %v1209 = vadd.f32 %v1189, %v1198
      %v1210 = vadd.f32 %v1190, %v1198
      %v1211 = vadd.f32 %v1191, %v1198
      %v1212 = vadd.f32 %v1192, %v1198
      %v1213 = vadd.f32 %v1193, %v1198
      %v1214 = vadd.f32 %v1194, %v1198
      %v1215 = vadd.f32 %v1195, %v1198
      %vm1216 = vcmask 64512
      %1217 = vst.msk [vmem:[%s170] sm:$0xff] %vm1216, %v1200
      %1218 = vst.msk [vmem:[%s170 + $0x8] sm:$0xff] %vm1216, %v1201
      %1219 = vst.msk [vmem:[%s170 + $0x10] sm:$0xff] %vm1216, %v1202
      %1220 = vst.msk [vmem:[%s170 + $0x18] sm:$0xff] %vm1216, %v1203
      %1221 = vst.msk [vmem:[%s170 + $0x20] sm:$0xff] %vm1216, %v1204
      %1222 = vst.msk [vmem:[%s170 + $0x28] sm:$0xff] %vm1216, %v1205
      %1223 = vst.msk [vmem:[%s170 + $0x30] sm:$0xff] %vm1216, %v1206
      %1224 = vst.msk [vmem:[%s170 + $0x38] sm:$0xff] %vm1216, %v1207
      %1225 = vst.msk [vmem:[%s170 + $0x40] sm:$0xff] %vm1216, %v1208
      %1226 = vst.msk [vmem:[%s170 + $0x48] sm:$0xff] %vm1216, %v1209
      %1227 = vst.msk [vmem:[%s170 + $0x50] sm:$0xff] %vm1216, %v1210
      %1228 = vst.msk [vmem:[%s170 + $0x58] sm:$0xff] %vm1216, %v1211
      %1229 = vst.msk [vmem:[%s170 + $0x60] sm:$0xff] %vm1216, %v1212
      %1230 = vst.msk [vmem:[%s170 + $0x68] sm:$0xff] %vm1216, %v1213
      %1231 = vst.msk [vmem:[%s170 + $0x70] sm:$0xff] %vm1216, %v1214
      %1232 = vst.msk [vmem:[%s170 + $0x78] sm:$0xff] %vm1216, %v1215
      %p1233 = scmp.lt.s32.totalorder %s14, 3
      %s1234 = scalar_select %p1233, %s14, 3
      %s1235 = smul.addr %s1234, 16
      %s1236 = smul.addr %s1235, 8
      %s1237 = scalar_lea.vmem %s3, %s1236
      // Predicated region
      $region33: #{tpu_custom_call.1} parent=31 // pred_check
        %p1238 = pneg %p100
      $region34: #{tpu_custom_call.1} parent=31 // pred_check_branch
        %1240 = sbr.rel (%p1238) target = $region36
      $region35: #{tpu_custom_call.1} parent=31 // pred_region
        _
      $region36: #{tpu_custom_call.1} parent=31 // pred_fallthru
        _
    $region32: #{tpu_custom_call.1} parent=5 // pred_fallthru
      _
    %p1241 = scmp.le.s32.totalorder 2, %s9
    // Predicated region
    $region37: #{tpu_custom_call.1} parent=5 // pred_check
      %p1242 = pneg %p1241
    $region38: #{tpu_custom_call.1} parent=5 // pred_check_branch
      %1244 = sbr.rel (%p1242) target = $region40
    $region39: #{tpu_custom_call.1} parent=5 // pred_region
      %s1245 = ssub.s32 %s9, 2
      // Predicated region
      $region41: #{tpu_custom_call.1} parent=39 // pred_check
        %p1246 = pneg %p106
      $region42: #{tpu_custom_call.1} parent=39 // pred_check_branch
        %1248 = sbr.rel (%p1246) target = $region44
      $region43: #{tpu_custom_call.1} parent=39 // pred_region
        %p1249 = scmp.lt.s32.totalorder %s15, 3
        %s1250 = scalar_select %p1249, %s15, 3
        %s1251 = smul.addr %s1250, 16
        %s1252 = smul.addr %s1251, 8
        %s1253 = scalar_lea.vmem %s3, %s1252
      $region44: #{tpu_custom_call.1} parent=39 // pred_fallthru
        _
    $region40: #{tpu_custom_call.1} parent=5 // pred_fallthru
      _
  $region6: #{tpu_custom_call.1} parent=0 // loop_footer
    %s13 = sadd.s32 1, %s9
  $region7: #{tpu_custom_call.1} parent=0 // loop_footer_branch
    %8 = sbr.rel target = $region3
  $region8: #{tpu_custom_call.1} parent=0 // loop_exit
    _

</llo_original>
